<compile_context>
chip_gen: v5e
topology: v5e:2x2
jax: 0.10.0
libtpu: 0.0.40
codegen_flags: <defaults>
</compile_context>

<pallas_src>
import functools

import jax
import jax.numpy as jnp
from jax.experimental import pallas as pl
from jax.experimental.pallas import tpu as pltpu

LANES = 128
SUBLANES = 8
MAX_TILE_ROWS = 2048  # 2048*128*4 B = 1 MiB per operand per block


def _abs_mean_delta_kernel(pred_ref, target_ref, out_ref, *,
                           tile_rows, valid_rows, ragged, blocks_per_shard):
    j = pl.program_id(1)  # reduction (streaming) axis

    @pl.when(j == 0)
    def _init():
        out_ref[...] = jnp.zeros_like(out_ref)

    # Cast per-tile inside VMEM (free on the VPU); inputs stream in native dtype.
    delta = pred_ref[...].astype(jnp.float32) - target_ref[...].astype(jnp.float32)

    if ragged:
        # Only the last (partial) block has out-of-range rows; zero them out so
        # unspecified OOB data never reaches the accumulator.
        s = pl.program_id(0)
        row0 = (s * blocks_per_shard + j) * tile_rows
        row_ids = row0 + jax.lax.broadcasted_iota(jnp.int32, (tile_rows, LANES), 0)
        delta = jnp.where(row_ids < valid_rows, delta, 0.0)

    # Fold (tile_rows, 128) onto the resident (8, 128) partial: pure VPU adds,
    # no cross-lane/sublane traffic inside the streaming loop.
    out_ref[...] += delta.reshape(tile_rows // SUBLANES, SUBLANES, LANES).sum(axis=0)


def abs_mean_delta_loss(pred, target):
    assert pred.shape == target.shape, "pred/target must have identical shapes"
    total = pred.size
    inv_total = 1.0 / float(total)  # host-side f64 reciprocal

    p = jnp.ravel(pred)
    t = jnp.ravel(target)

    # Pad (native dtype, zeros) only when needed to reach a multiple of 8*128.
    chunk = SUBLANES * LANES
    rem = total % chunk
    if rem:
        pad = chunk - rem
        p = jnp.pad(p, (0, pad))
        t = jnp.pad(t, (0, pad))
    rows = p.size // LANES  # always a multiple of 8

    p2 = p.reshape(rows, LANES)
    t2 = t.reshape(rows, LANES)

    tile_rows = min(rows, MAX_TILE_ROWS)          # multiple of 8 by construction
    blocks_total = (rows + tile_rows - 1) // tile_rows
    ragged = (rows % tile_rows) != 0

    # Shard the stream across 2 TensorCores (v7x) when there is enough work and
    # the block count splits evenly; otherwise a single shard.
    num_shards = 2 if (blocks_total >= 4 and blocks_total % 2 == 0) else 1
    blocks_per_shard = blocks_total // num_shards

    kernel = functools.partial(
        _abs_mean_delta_kernel,
        tile_rows=tile_rows,
        valid_rows=rows,
        ragged=ragged,
        blocks_per_shard=blocks_per_shard,
    )

    in_map = lambda s, j: (s * blocks_per_shard + j, 0)

    partials = pl.pallas_call(
        kernel,
        out_shape=jax.ShapeDtypeStruct((num_shards * SUBLANES, LANES), jnp.float32),
        grid_spec=pltpu.PrefetchScalarGridSpec(
            num_scalar_prefetch=0,
            grid=(num_shards, blocks_per_shard),
            in_specs=[
                pl.BlockSpec((tile_rows, LANES), in_map),
                pl.BlockSpec((tile_rows, LANES), in_map),
            ],
            # Per-shard lane-dense (8,128) partial; block index constant along j
            # so it stays resident in VMEM across the reduction axis.
            out_specs=pl.BlockSpec((SUBLANES, LANES), lambda s, j: (s, 0)),
        ),
        compiler_params=pltpu.CompilerParams(
            # Shard axis parallel (megacore), streaming/reduction axis arbitrary.
            # Tiles are capped at 4 MiB double-buffered, so the default scoped
            # VMEM limit is sufficient on v5e/v6e/v7x; no vmem_limit override.
            dimension_semantics=("parallel", "arbitrary"),
        ),
    )(p2, t2)

    # Tiny final combine: one cross-lane reduce over <= 2*8*128 f32 values.
    return jnp.abs(jnp.sum(partials) * inv_total)


if __name__ == "__main__":
    key = jax.random.PRNGKey(0)
    k1, k2 = jax.random.split(key)
    # NCHW inputs, as the PyTorch module would receive.
    pred = jax.random.normal(k1, (2, 4, 16, 16), dtype=jnp.float32)
    target = jax.random.normal(k2, (2, 4, 16, 16), dtype=jnp.float32)

    loss = jax.block_until_ready(abs_mean_delta_loss(pred, target))

    # Cross-check against plain JAX reference.
    ref = jnp.abs(jnp.mean(pred - target))
    assert jnp.allclose(loss, ref, atol=1e-6, rtol=1e-6), (loss, ref)

    print("KERNEL_OK")
</pallas_src>

<mosaic_0001>
module attributes {stable_mosaic.version = 11 : i64} {
  func.func @_abs_mean_delta_kernel(%arg0: i32, %arg1: i32, %arg2: memref<16x128xf32, #tpu.memory_space<vmem>>, %arg3: memref<16x128xf32, #tpu.memory_space<vmem>>, %arg4: memref<8x128xf32, #tpu.memory_space<vmem>>) attributes {dimension_semantics = [#tpu.dimension_semantics<parallel>, #tpu.dimension_semantics<arbitrary>], iteration_bounds = array<i64: 1, 1>, scalar_prefetch = 0 : i64, scratch_operands = 0 : i64, tpu.core_type = #tpu.core_type<tc>, window_params = [{transform_indices = @transform_0, window_bounds = array<i64: 16, 128>}, {transform_indices = @transform_1, window_bounds = array<i64: 16, 128>}, {transform_indices = @transform_2, window_bounds = array<i64: 8, 128>}]} {
    %c0_i32 = arith.constant 0 : i32
    %0 = arith.cmpi eq, %arg1, %c0_i32 : i32
    %1 = arith.extui %0 : i1 to i32
    %c0_i32_0 = arith.constant 0 : i32
    %2 = arith.cmpi ne, %1, %c0_i32_0 : i32
    scf.if %2 {
      %cst_8 = arith.constant 0.000000e+00 : f32
      %11 = vector.broadcast %cst_8 : f32 to vector<8x128xf32>
      %c0_9 = arith.constant 0 : index
      %c0_10 = arith.constant 0 : index
      %12 = vector.load %arg4[%c0_9, %c0_10] : memref<8x128xf32, #tpu.memory_space<vmem>>, vector<8x128xf32>
      tpu.vector_store %arg4[%c0_9, %c0_10], %11 {strides = array<i32>} : memref<8x128xf32, #tpu.memory_space<vmem>>, vector<8x128xf32>,
    } else {
    }
    %c0 = arith.constant 0 : index
    %c0_1 = arith.constant 0 : index
    %3 = vector.load %arg2[%c0, %c0_1] : memref<16x128xf32, #tpu.memory_space<vmem>>, vector<16x128xf32>
    %c0_2 = arith.constant 0 : index
    %c0_3 = arith.constant 0 : index
    %4 = vector.load %arg3[%c0_2, %c0_3] : memref<16x128xf32, #tpu.memory_space<vmem>>, vector<16x128xf32>
    %5 = arith.subf %3, %4 : vector<16x128xf32>
    %c0_4 = arith.constant 0 : index
    %c0_5 = arith.constant 0 : index
    %6 = vector.load %arg4[%c0_4, %c0_5] : memref<8x128xf32, #tpu.memory_space<vmem>>, vector<8x128xf32>
    %7 = vector.shape_cast %5 : vector<16x128xf32> to vector<2x8x128xf32>
    %cst = arith.constant dense<0.000000e+00> : vector<8x128xf32>
    %8 = vector.multi_reduction <add>, %7, %cst [0] : vector<2x8x128xf32> to vector<8x128xf32>
    %9 = arith.addf %6, %8 : vector<8x128xf32>
    %c0_6 = arith.constant 0 : index
    %c0_7 = arith.constant 0 : index
    %10 = vector.load %arg4[%c0_6, %c0_7] : memref<8x128xf32, #tpu.memory_space<vmem>>, vector<8x128xf32>
    tpu.vector_store %arg4[%c0_6, %c0_7], %9 {strides = array<i32>} : memref<8x128xf32, #tpu.memory_space<vmem>>, vector<8x128xf32>,
    return
  }
  func.func @transform_0(%arg0: i32, %arg1: i32) -> (i32, i32) {
    %c1_i32 = arith.constant 1 : i32
    %0 = arith.muli %arg0, %c1_i32 : i32
    %1 = arith.addi %0, %arg1 : i32
    %c0_i32 = arith.constant 0 : i32
    %c0_i32_0 = arith.constant 0 : i32
    return %1, %c0_i32 : i32, i32
  }
  func.func @transform_1(%arg0: i32, %arg1: i32) -> (i32, i32) {
    %c1_i32 = arith.constant 1 : i32
    %0 = arith.muli %arg0, %c1_i32 : i32
    %1 = arith.addi %0, %arg1 : i32
    %c0_i32 = arith.constant 0 : i32
    %c0_i32_0 = arith.constant 0 : i32
    return %1, %c0_i32 : i32, i32
  }
  func.func @transform_2(%arg0: i32, %arg1: i32) -> (i32, i32) {
    %c0_i32 = arith.constant 0 : i32
    %c0_i32_0 = arith.constant 0 : i32
    return %arg0, %c0_i32 : i32, i32
  }
}

</mosaic_0001>

<llo_original>
// kernel: tpu_custom_call.1
$region0: #{tpu_custom_call.1}
  #allocation0 [shape = 'u32[]', space=smem, size = 0x4, offset = 0x4, fixed_abs, tag = 'smem constant byte address 0x4 - core index']
  #allocation1 [shape = 'u32[72,128]{1,0:T(1,128)}', space=vmem, size = 0x9000, scoped, tag = 'internal scratch']
  %s0 = inlined_call_operand.hbm [shape: f32[16,128], index: 0, kind: input, shape index: {}]
  %s1 = inlined_call_operand.hbm [shape: f32[16,128], index: 1, kind: input, shape index: {}]
  %s2 = inlined_call_operand.hbm [shape: f32[8,128], index: 2, kind: output, shape index: {}]
  %s3 = sld [smem:[#allocation0]]
  $region30: #{tpu_custom_call.1} parent=0
    _
  %s5 = ssub.s32 1, %s3
  %s6 = scalar_select 0, %s5, %s3
  $region1: #{tpu_custom_call.1} parent=0
    #allocation2 [shape = 'u8[8192]{0}', space=vmem, size = 0x2000, scoped, tag = 'input window, operand 0, single buffered']
    #allocation3 [shape = 's32[1]{0}', space=sflag, size = 0x4, scoped, tag = 'scoped memory for tpu_custom_call.1']
    #allocation4 [shape = 's32[1]{0}', space=sflag, size = 0x4, scoped, tag = 'scoped memory for tpu_custom_call.1']
    #allocation5 [shape = 'u8[8192]{0}', space=vmem, size = 0x2000, scoped, tag = 'input window, operand 1, single buffered']
    #allocation6 [shape = 's32[1]{0}', space=sflag, size = 0x4, scoped, tag = 'scoped memory for tpu_custom_call.1']
    #allocation7 [shape = 'u8[4096]{0}', space=vmem, size = 0x1000, scoped, tag = 'output window, operand 0, single buffered']
    %7 = vsyncpa [#allocation3], 0
    %8 = vsyncpa [#allocation6], 0
    %9 = vsyncpa [#allocation4], 0
    // Predicated region
    $region2: #{tpu_custom_call.1} parent=1 // pred_check
      _
    $region3: #{tpu_custom_call.1} parent=1 // pred_check_branch
      %11 = sbr.rel (0) target = $region5
    $region4: #{tpu_custom_call.1} parent=1 // pred_region
      %s12 = sadd.s32 0, 0
      %s13 = smul.u32 2, %s12
      %15 = vsyncadd [#allocation3], 0
      %s16 = smul.addr %s13, 8
      %s17 = scalar_lea.hbm %s0, %s16
      %s18 = sshll.u32 %s17, 4
      %s19 = int_to_ptr.hbm [resolvable:$true] %s18
      %s20 = sshll.u32 [#allocation2], 4
      %s21 = int_to_ptr.vmem [resolvable:$true] %s20
      %26 = dma.hbm_to_vmem [thread:$0]  %s19, 256, %s21, [#allocation3], 128, 128, 8
    $region5: #{tpu_custom_call.1} parent=1 // pred_fallthru
      _
    // Predicated region
    $region6: #{tpu_custom_call.1} parent=1 // pred_check
      _
    $region7: #{tpu_custom_call.1} parent=1 // pred_check_branch
      %28 = sbr.rel (0) target = $region9
    $region8: #{tpu_custom_call.1} parent=1 // pred_region
      %s29 = sadd.s32 0, 0
      %s30 = smul.u32 2, %s29
      %32 = vsyncadd [#allocation6], 0
      %s33 = smul.addr %s30, 8
      %s34 = scalar_lea.hbm %s1, %s33
      %s35 = sshll.u32 %s34, 4
      %s36 = int_to_ptr.hbm [resolvable:$true] %s35
      %s37 = sshll.u32 [#allocation5], 4
      %s38 = int_to_ptr.vmem [resolvable:$true] %s37
      %43 = dma.hbm_to_vmem [thread:$0]  %s36, 256, %s38, [#allocation6], 128, 128, 8
    $region9: #{tpu_custom_call.1} parent=1 // pred_fallthru
      _
    // Predicated region
    $region10: #{tpu_custom_call.1} parent=1 // pred_check
      _
    $region11: #{tpu_custom_call.1} parent=1 // pred_check_branch
      %45 = sbr.rel (0) target = $region13
    $region12: #{tpu_custom_call.1} parent=1 // pred_region
      %47 = dma.done [#allocation3], 256
    $region13: #{tpu_custom_call.1} parent=1 // pred_fallthru
      _
    // Predicated region
    $region14: #{tpu_custom_call.1} parent=1 // pred_check
      _
    $region15: #{tpu_custom_call.1} parent=1 // pred_check_branch
      %49 = sbr.rel (0) target = $region17
    $region16: #{tpu_custom_call.1} parent=1 // pred_region
      %51 = dma.done [#allocation6], 256
    $region17: #{tpu_custom_call.1} parent=1 // pred_fallthru
      _
    %s52 = sadd.s32 0, 0
    %s53 = smul.u32 2, %s52
    %s54 = sadd.s32 0, 0
    %s55 = smul.u32 2, %s54
    %p56 = scmp.eq.s32.totalorder 0, 0
    // Predicated region
    $region18: #{tpu_custom_call.1} parent=1 // pred_check
      %p57 = pneg %p56
    $region19: #{tpu_custom_call.1} parent=1 // pred_check_branch
      %59 = sbr.rel (%p57) target = $region21
    $region20: #{tpu_custom_call.1} parent=1 // pred_region
      %60 = vst [vmem:[#allocation7] sm:$0xff] 0.0
    $region21: #{tpu_custom_call.1} parent=1 // pred_fallthru
      _
    %v61 = vld [vmem:[#allocation2] sm:$0xff]
    %v62 = vld [vmem:[#allocation2 + $0x8] sm:$0xff]
    %v63 = vld [vmem:[#allocation5] sm:$0xff]
    %v64 = vld [vmem:[#allocation5 + $0x8] sm:$0xff]
    %v65 = vsub.f32 %v61, %v63
    %v66 = vsub.f32 %v62, %v64
    %v67 = vld [vmem:[#allocation7] sm:$0xff]
    %v68 = vadd.f32 %v65, %v66
    %v69 = vadd.f32 %v67, %v68
    %70 = vst [vmem:[#allocation7] sm:$0xff] %v69
    // Predicated region
    $region22: #{tpu_custom_call.1} parent=1 // pred_check
      _
    $region23: #{tpu_custom_call.1} parent=1 // pred_check_branch
      %72 = sbr.rel (0) target = $region25
    $region24: #{tpu_custom_call.1} parent=1 // pred_region
      %74 = vsyncadd [#allocation4], 0
      %s76 = sshll.u32 [#allocation7], 4
      %s77 = int_to_ptr.vmem [resolvable:$true] %s76
      %s78 = sshll.u32 %s2, 4
      %s79 = int_to_ptr.hbm [resolvable:$true] %s78
      %81 = dma.vmem_to_hbm [thread:$0]  %s77, 128, %s79, [#allocation4]
    $region25: #{tpu_custom_call.1} parent=1 // pred_fallthru
      _
    // Predicated region
    $region26: #{tpu_custom_call.1} parent=1 // pred_check
      _
    $region27: #{tpu_custom_call.1} parent=1 // pred_check_branch
      %83 = sbr.rel (0) target = $region29
    $region28: #{tpu_custom_call.1} parent=1 // pred_region
      %85 = dma.done [#allocation4], 128
    $region29: #{tpu_custom_call.1} parent=1 // pred_fallthru
      _
    %86 = vsyncpa [#allocation3], 1
    %87 = vsyncpa [#allocation6], 1
    %88 = vsyncpa [#allocation4], 1

</llo_original>
